<compile_context>
chip_gen: v5e
topology: v5e:2x2
jax: 0.10.0
libtpu: 0.0.40
codegen_flags: <defaults>
</compile_context>

<pallas_src>
import functools

import jax
import jax.numpy as jnp
from jax.experimental import pallas as pl
from jax.experimental.pallas import tpu as pltpu

_LANE = 128          # lane (last-dim) granularity
_SUBLANE_BF16 = 16   # sublane granularity for bf16 tiles
_MAX_TILE_B = 128    # batch tile cap
_MAX_TILE_K = 512    # K tile cap (keeps double-buffered tiles well inside v7x VMEM)


def _round_up(x, m):
    return (x + m - 1) // m * m


def _batch_tiling(batch):
    if batch <= _MAX_TILE_B:
        tb = _round_up(batch, _SUBLANE_BF16)
        return tb, tb                      # (padded batch, tile)
    return _round_up(batch, _MAX_TILE_B), _MAX_TILE_B


def _k_tiling(k):
    if k <= _MAX_TILE_K:
        tk = _round_up(k, _LANE)
        return tk, tk                      # (padded K, tile)
    return _round_up(k, _MAX_TILE_K), _MAX_TILE_K


def text_encoder_kernel(x_ref, w_ref, b_ref, o_ref, acc_ref):
    k = pl.program_id(1)

    @pl.when(k == 0)
    def _():
        acc_ref[...] = jnp.zeros_like(acc_ref)

    # ReLU is applied BEFORE the linear layer (matches the PyTorch module).
    x = jnp.maximum(x_ref[...], 0)                                   # bf16 on the VPU
    acc_ref[...] += jnp.dot(x, w_ref[...],
                            preferred_element_type=jnp.float32)      # bf16 MXU, f32 acc

    @pl.when(k == pl.num_programs(1) - 1)
    def _():
        y = acc_ref[...] + b_ref[...]                                # bias add in f32
        sq = jnp.sum(y * y, axis=1, keepdims=True)                   # pad cols are exactly 0
        inv = jax.lax.rsqrt(jnp.maximum(sq, 1e-12))                  # EUP rsqrt, eps-guarded
        o_ref[...] = (y * inv).astype(o_ref.dtype)


def prepare_text_encoder_params(weight, bias):
    """One-time parameter prep (NOT in the per-call path): transpose torch-layout
    (embed, in) weight to (K, N), zero-pad K/N to tile boundaries, cast weight to
    bf16 for the MXU fast path. Bias stays f32 (padded columns are zero)."""
    weight = jnp.asarray(weight, jnp.float32)
    bias = jnp.asarray(bias, jnp.float32)
    embed_size, input_size = weight.shape
    k_pad, _ = _k_tiling(input_size)
    n_pad = _round_up(embed_size, _LANE)
    w_t = jnp.zeros((k_pad, n_pad), jnp.bfloat16)
    w_t = w_t.at[:input_size, :embed_size].set(weight.T.astype(jnp.bfloat16))
    b_row = jnp.zeros((1, n_pad), jnp.float32).at[0, :embed_size].set(bias)
    return w_t, b_row, int(embed_size), int(input_size)


@functools.partial(jax.jit, static_argnames=("embed_size", "input_size"))
def text_encoder(x, w_t, b_row, embed_size, input_size):
    """x: (B, input_size) or (input_size,). w_t/b_row from prepare_text_encoder_params."""
    x = jnp.asarray(x)
    if x.ndim == 1:                        # mirror torch's unsqueeze(0) for 1-D input
        x = x[None, :]
    batch = x.shape[0]
    k_pad, n_pad = w_t.shape
    _, tile_k = _k_tiling(input_size)
    b_pad, tile_b = _batch_tiling(batch)

    # Per-call: pad + bf16-cast activations (halves HBM traffic into the kernel).
    xb = jnp.zeros((b_pad, k_pad), jnp.bfloat16)
    xb = xb.at[:batch, :input_size].set(x.astype(jnp.bfloat16))

    grid = (b_pad // tile_b, k_pad // tile_k)

    cost = pl.CostEstimate(
        flops=2 * b_pad * k_pad * n_pad,
        transcendentals=b_pad,
        bytes_accessed=(b_pad * k_pad * 2 + k_pad * n_pad * 2
                        + n_pad * 4 + b_pad * n_pad * 4),
    )

    out = pl.pallas_call(
        text_encoder_kernel,
        out_shape=jax.ShapeDtypeStruct((b_pad, n_pad), jnp.float32),
        grid_spec=pltpu.PrefetchScalarGridSpec(
            num_scalar_prefetch=0,
            grid=grid,
            in_specs=[
                pl.BlockSpec((tile_b, tile_k), lambda i, k: (i, k)),   # activations
                pl.BlockSpec((tile_k, n_pad), lambda i, k: (k, 0)),    # weight (pre-T, bf16)
                pl.BlockSpec((1, n_pad), lambda i, k: (0, 0)),         # bias (f32)
            ],
            out_specs=pl.BlockSpec((tile_b, n_pad), lambda i, k: (i, 0)),
            scratch_shapes=[pltpu.VMEM((tile_b, n_pad), jnp.float32)],
        ),
        compiler_params=pltpu.CompilerParams(
            dimension_semantics=("parallel", "arbitrary")),
        cost_estimate=cost,
    )(xb, w_t, b_row)

    return out[:batch, :embed_size]


if __name__ == "__main__":
    # Deterministic synthetic parameters (torch Linear init style: U(-1/sqrt(in), 1/sqrt(in)))
    input_size, embed_size, batch = 32, 16, 2
    key = jax.random.PRNGKey(0)
    kx, kw, kb = jax.random.split(key, 3)
    bound = 1.0 / jnp.sqrt(jnp.float32(input_size))
    weight = jax.random.uniform(kw, (embed_size, input_size), jnp.float32, -bound, bound)
    bias = jax.random.uniform(kb, (embed_size,), jnp.float32, -bound, bound)
    x = jax.random.normal(kx, (batch, input_size), jnp.float32)

    w_t, b_row, n_emb, n_in = prepare_text_encoder_params(weight, bias)
    out = text_encoder(x, w_t, b_row, n_emb, n_in)
    out = jax.block_until_ready(out)

    # Pure-JAX reference with the same bf16-matmul / f32-accumulate numerics.
    xr = jnp.maximum(x, 0.0).astype(jnp.bfloat16)
    wr = jnp.asarray(weight, jnp.float32).astype(jnp.bfloat16)
    y = jnp.dot(xr, wr.T, preferred_element_type=jnp.float32) + bias
    ref = y / jnp.sqrt(jnp.maximum(jnp.sum(y * y, axis=1, keepdims=True), 1e-12))

    assert out.shape == (batch, embed_size)
    assert jnp.allclose(out, ref, atol=2e-5, rtol=2e-5), float(jnp.max(jnp.abs(out - ref)))

    print("KERNEL_OK")
</pallas_src>

<mosaic_0001>
module attributes {stable_mosaic.version = 11 : i64} {
  func.func @text_encoder_kernel(%arg0: i32, %arg1: i32, %arg2: memref<16x128xbf16, #tpu.memory_space<vmem>>, %arg3: memref<128x128xbf16, #tpu.memory_space<vmem>>, %arg4: memref<1x128xf32, #tpu.memory_space<vmem>>, %arg5: memref<16x128xf32, #tpu.memory_space<vmem>>, %arg6: memref<16x128xf32, #tpu.memory_space<vmem>>) attributes {dimension_semantics = [#tpu.dimension_semantics<parallel>, #tpu.dimension_semantics<arbitrary>], iteration_bounds = array<i64: 1, 1>, scalar_prefetch = 0 : i64, scratch_operands = 1 : i64, tpu.core_type = #tpu.core_type<tc>, window_params = [{transform_indices = @transform_0, window_bounds = array<i64: 16, 128>}, {transform_indices = @transform_1, window_bounds = array<i64: 128, 128>}, {pipeline_mode = #tpu.pipeline_mode<synchronous>, transform_indices = @transform_2, window_bounds = array<i64: 1, 128>}, {transform_indices = @transform_3, window_bounds = array<i64: 16, 128>}]} {
    %c0_i32 = arith.constant 0 : i32
    %0 = arith.cmpi eq, %arg1, %c0_i32 : i32
    %1 = arith.extui %0 : i1 to i32
    %c0_i32_0 = arith.constant 0 : i32
    %2 = arith.cmpi ne, %1, %c0_i32_0 : i32
    scf.if %2 {
      %cst_11 = arith.constant 0.000000e+00 : f32
      %14 = vector.broadcast %cst_11 : f32 to vector<16x128xf32>
      %c0_12 = arith.constant 0 : index
      %c0_13 = arith.constant 0 : index
      %15 = vector.load %arg6[%c0_12, %c0_13] : memref<16x128xf32, #tpu.memory_space<vmem>>, vector<16x128xf32>
      tpu.vector_store %arg6[%c0_12, %c0_13], %14 {strides = array<i32>} : memref<16x128xf32, #tpu.memory_space<vmem>>, vector<16x128xf32>,
    } else {
    }
    %c0 = arith.constant 0 : index
    %c0_1 = arith.constant 0 : index
    %3 = vector.load %arg2[%c0, %c0_1] : memref<16x128xbf16, #tpu.memory_space<vmem>>, vector<16x128xbf16>
    %cst = arith.constant 0.000000e+00 : bf16
    %4 = vector.broadcast %cst : bf16 to vector<16x128xbf16>
    %5 = arith.maximumf %3, %4 : vector<16x128xbf16>
    %c0_2 = arith.constant 0 : index
    %c0_3 = arith.constant 0 : index
    %6 = vector.load %arg6[%c0_2, %c0_3] : memref<16x128xf32, #tpu.memory_space<vmem>>, vector<16x128xf32>
    %c0_4 = arith.constant 0 : index
    %c0_5 = arith.constant 0 : index
    %7 = vector.load %arg3[%c0_4, %c0_5] : memref<128x128xbf16, #tpu.memory_space<vmem>>, vector<128x128xbf16>
    %cst_6 = arith.constant dense<0.000000e+00> : vector<16x128xf32>
    %8 = tpu.matmul %5, %7, %cst_6 {dimension_numbers = #tpu.dot_dimension_numbers<[1], [0], [0], [1], [0, 0, 1, 1], [], []>} : vector<16x128xbf16>, vector<128x128xbf16>, vector<16x128xf32> -> vector<16x128xf32>
    %9 = arith.addf %6, %8 : vector<16x128xf32>
    %c0_7 = arith.constant 0 : index
    %c0_8 = arith.constant 0 : index
    %10 = vector.load %arg6[%c0_7, %c0_8] : memref<16x128xf32, #tpu.memory_space<vmem>>, vector<16x128xf32>
    tpu.vector_store %arg6[%c0_7, %c0_8], %9 {strides = array<i32>} : memref<16x128xf32, #tpu.memory_space<vmem>>, vector<16x128xf32>,
    %c0_i32_9 = arith.constant 0 : i32
    %11 = arith.cmpi eq, %arg1, %c0_i32_9 : i32
    %12 = arith.extui %11 : i1 to i32
    %c0_i32_10 = arith.constant 0 : i32
    %13 = arith.cmpi ne, %12, %c0_i32_10 : i32
    scf.if %13 {
      %c0_11 = arith.constant 0 : index
      %c0_12 = arith.constant 0 : index
      %14 = vector.load %arg6[%c0_11, %c0_12] : memref<16x128xf32, #tpu.memory_space<vmem>>, vector<16x128xf32>
      %c0_13 = arith.constant 0 : index
      %c0_14 = arith.constant 0 : index
      %15 = vector.load %arg4[%c0_13, %c0_14] : memref<1x128xf32, #tpu.memory_space<vmem>>, vector<1x128xf32>
      %16 = vector.broadcast %15 : vector<1x128xf32> to vector<16x128xf32>
      %17 = arith.addf %14, %16 : vector<16x128xf32>
      %18 = arith.mulf %17, %17 : vector<16x128xf32>
      %cst_15 = arith.constant dense<0.000000e+00> : vector<16xf32>
      %19 = vector.multi_reduction <add>, %18, %cst_15 [1] : vector<16x128xf32> to vector<16xf32>
      %20 = vector.shape_cast %19 : vector<16xf32> to vector<16x1xf32>
      %cst_16 = arith.constant 9.99999996E-13 : f32
      %21 = vector.broadcast %cst_16 : f32 to vector<16x1xf32>
      %22 = arith.maximumf %20, %21 : vector<16x1xf32>
      %23 = math.rsqrt %22 : vector<16x1xf32>
      %24 = vector.broadcast %23 : vector<16x1xf32> to vector<16x128xf32>
      %25 = arith.mulf %17, %24 : vector<16x128xf32>
      %c0_17 = arith.constant 0 : index
      %c0_18 = arith.constant 0 : index
      %26 = vector.load %arg5[%c0_17, %c0_18] : memref<16x128xf32, #tpu.memory_space<vmem>>, vector<16x128xf32>
      tpu.vector_store %arg5[%c0_17, %c0_18], %25 {strides = array<i32>} : memref<16x128xf32, #tpu.memory_space<vmem>>, vector<16x128xf32>,
    } else {
    }
    return
  }
  func.func @transform_0(%arg0: i32, %arg1: i32) -> (i32, i32) {
    %c0_i32 = arith.constant 0 : i32
    return %arg0, %arg1 : i32, i32
  }
  func.func @transform_1(%arg0: i32, %arg1: i32) -> (i32, i32) {
    %c0_i32 = arith.constant 0 : i32
    %c0_i32_0 = arith.constant 0 : i32
    return %arg1, %c0_i32 : i32, i32
  }
  func.func @transform_2(%arg0: i32, %arg1: i32) -> (i32, i32) {
    %c0_i32 = arith.constant 0 : i32
    %c0_i32_0 = arith.constant 0 : i32
    %c0_i32_1 = arith.constant 0 : i32
    return %c0_i32, %c0_i32_0 : i32, i32
  }
  func.func @transform_3(%arg0: i32, %arg1: i32) -> (i32, i32) {
    %c0_i32 = arith.constant 0 : i32
    %c0_i32_0 = arith.constant 0 : i32
    return %arg0, %c0_i32 : i32, i32
  }
}

</mosaic_0001>

<llo_original>
// kernel: text_encoder.1
$region0: #{text_encoder.1}
  #allocation0 [shape = 'u32[]', space=smem, size = 0x4, offset = 0x4, fixed_abs, tag = 'smem constant byte address 0x4 - core index']
  #allocation1 [shape = 'u32[72,128]{1,0:T(1,128)}', space=vmem, size = 0x9000, scoped, tag = 'internal scratch']
  #allocation2 [shape = 'f32[16,128]{1,0:T(8,128)}', space=vmem, size = 0x2000, scoped, tag = 'scratch operand']
  %s0 = inlined_call_operand.vmem [shape: bf16[16,128], index: 0, kind: input, shape index: {}]
  %s1 = inlined_call_operand.hbm [shape: bf16[128,128], index: 1, kind: input, shape index: {}]
  %s2 = inlined_call_operand.vmem [shape: f32[1,128], index: 2, kind: input, shape index: {}]
  %s3 = inlined_call_operand.vmem [shape: f32[16,128], index: 3, kind: output, shape index: {}]
  %s4 = sld [smem:[#allocation0]]
  $region34: #{text_encoder.1} parent=0
    _
  %s6 = ssub.s32 1, %s4
  %s7 = scalar_select 0, %s6, %s4
  $region1: #{text_encoder.1} parent=0
    #allocation3 [shape = 'u8[32768]{0}', space=vmem, size = 0x8000, scoped, tag = 'input window, operand 1, single buffered']
    #allocation4 [shape = 's32[1]{0}', space=sflag, size = 0x4, scoped, tag = 'scoped memory for text_encoder.1']
    %8 = vsyncpa [#allocation4], 0
    // Predicated region
    $region2: #{text_encoder.1} parent=1 // pred_check
      _
    $region3: #{text_encoder.1} parent=1 // pred_check_branch
      %10 = sbr.rel (0) target = $region5
    $region4: #{text_encoder.1} parent=1 // pred_region
      _
    $region5: #{text_encoder.1} parent=1 // pred_fallthru
      _
    // Predicated region
    $region6: #{text_encoder.1} parent=1 // pred_check
      _
    $region7: #{text_encoder.1} parent=1 // pred_check_branch
      %12 = sbr.rel (0) target = $region9
    $region8: #{text_encoder.1} parent=1 // pred_region
      %14 = vsyncadd [#allocation4], 0
      %s15 = sshll.u32 %s1, 4
      %s16 = int_to_ptr.hbm [resolvable:$true] %s15
      %s17 = sshll.u32 [#allocation3], 4
      %s18 = int_to_ptr.vmem [resolvable:$true] %s17
      %23 = dma.hbm_to_vmem [thread:$0]  %s16, 1024, %s18, [#allocation4], 64, 64, 4
    $region9: #{text_encoder.1} parent=1 // pred_fallthru
      _
    // Predicated region
    $region10: #{text_encoder.1} parent=1 // pred_check
      _
    $region11: #{text_encoder.1} parent=1 // pred_check_branch
      %25 = sbr.rel (0) target = $region13
    $region12: #{text_encoder.1} parent=1 // pred_region
      _
    $region13: #{text_encoder.1} parent=1 // pred_fallthru
      _
    // Predicated region
    $region14: #{text_encoder.1} parent=1 // pred_check
      _
    $region15: #{text_encoder.1} parent=1 // pred_check_branch
      %27 = sbr.rel (0) target = $region17
    $region16: #{text_encoder.1} parent=1 // pred_region
      %29 = dma.done [#allocation4], 1024
    $region17: #{text_encoder.1} parent=1 // pred_fallthru
      _
    %p30 = scmp.eq.s32.totalorder 0, 0
    // Predicated region
    $region18: #{text_encoder.1} parent=1 // pred_check
      %p31 = pneg %p30
    $region19: #{text_encoder.1} parent=1 // pred_check_branch
      %33 = sbr.rel (%p31) target = $region21
    $region20: #{text_encoder.1} parent=1 // pred_region
      %34 = vst [vmem:[#allocation2] sm:$0xff] 0.0
      %35 = vst [vmem:[#allocation2 + $0x8] sm:$0xff] 0.0
    $region21: #{text_encoder.1} parent=1 // pred_fallthru
      _
    %v36 = vld [vmem:[%s0] sm:$0xf]
    %v37 = vld [vmem:[%s0 + $0x4] sm:$0xf]
    %v38 = vunpack.c.l.bf16 %v36
    %v39 = vunpack.c.l.bf16 %v37
    %v40 = vmax.f32 %v38, 0.0
    %v41 = vmax.f32 %v39, 0.0
    %v42 = vpack.c.bf16 %v41, %v40
    %v43 = vld [vmem:[#allocation2] sm:$0xff]
    %v44 = vld [vmem:[#allocation2 + $0x8] sm:$0xff]
    %v45 = vld [vmem:[#allocation3] sm:$0xf]
    %v46 = vld [vmem:[#allocation3 + $0x4] sm:$0xf]
    %v47 = vld [vmem:[#allocation3 + $0x8] sm:$0xf]
    %v48 = vld [vmem:[#allocation3 + $0xc] sm:$0xf]
    %v49 = vld [vmem:[#allocation3 + $0x10] sm:$0xf]
    %v50 = vld [vmem:[#allocation3 + $0x14] sm:$0xf]
    %v51 = vld [vmem:[#allocation3 + $0x18] sm:$0xf]
    %v52 = vld [vmem:[#allocation3 + $0x1c] sm:$0xf]
    %v53 = vld [vmem:[#allocation3 + $0x20] sm:$0xf]
    %v54 = vld [vmem:[#allocation3 + $0x24] sm:$0xf]
    %v55 = vld [vmem:[#allocation3 + $0x28] sm:$0xf]
    %v56 = vld [vmem:[#allocation3 + $0x2c] sm:$0xf]
    %v57 = vld [vmem:[#allocation3 + $0x30] sm:$0xf]
    %v58 = vld [vmem:[#allocation3 + $0x34] sm:$0xf]
    %v59 = vld [vmem:[#allocation3 + $0x38] sm:$0xf]
    %v60 = vld [vmem:[#allocation3 + $0x3c] sm:$0xf]
    %v77 = vunpack.c.l.b16 %v45
    %v78 = vunpack.c.l.b16 %v46
    %v79 = vunpack.c.l.b16 %v47
    %v80 = vunpack.c.l.b16 %v48
    %v81 = vunpack.c.l.b16 %v49
    %v82 = vunpack.c.l.b16 %v50
    %v83 = vunpack.c.l.b16 %v51
    %v84 = vunpack.c.l.b16 %v52
    %v85 = vunpack.c.l.b16 %v53
    %v86 = vunpack.c.l.b16 %v54
    %v87 = vunpack.c.l.b16 %v55
    %v88 = vunpack.c.l.b16 %v56
    %v89 = vunpack.c.l.b16 %v57
    %v90 = vunpack.c.l.b16 %v58
    %v91 = vunpack.c.l.b16 %v59
    %v92 = vunpack.c.l.b16 %v60
    %v93 = vpack.c.b16 %v78, %v77
    %v94 = vpack.c.b16 %v80, %v79
    %v95 = vpack.c.b16 %v82, %v81
    %v96 = vpack.c.b16 %v84, %v83
    %v97 = vpack.c.b16 %v86, %v85
    %v98 = vpack.c.b16 %v88, %v87
    %v99 = vpack.c.b16 %v90, %v89
    %v100 = vpack.c.b16 %v92, %v91
    %109 = vmatpush.bf16.msra.mxu0 %v100
    %110 = vmatpush.bf16.msra.mxu0 %v99
    %111 = vmatpush.bf16.msra.mxu0 %v98
    %112 = vmatpush.bf16.msra.mxu0 %v97
    %113 = vmatpush.bf16.msra.mxu0 %v96
    %114 = vmatpush.bf16.msra.mxu0 %v95
    %115 = vmatpush.bf16.msra.mxu0 %v94
    %116 = vmatpush.bf16.msra.mxu0 %v93
    %117 = vmatmul.bf16.gmra.mxu0 %v42
    %v118 = vpop.f32.mrf.mxu0
    %v119 = vadd.f32 0.0, %v118
    %v120 = vpop.f32.mrf.mxu0
    %v121 = vadd.f32 0.0, %v120
    %122 = vdwg.mxu0
    %v123 = vadd.f32 %v43, %v119
    %v124 = vadd.f32 %v44, %v121
    %125 = vst [vmem:[#allocation2] sm:$0xff] %v123
    %126 = vst [vmem:[#allocation2 + $0x8] sm:$0xff] %v124
    // Predicated region
    $region22: #{text_encoder.1} parent=1 // pred_check
      %p127 = pneg %p30
    $region23: #{text_encoder.1} parent=1 // pred_check_branch
      %129 = sbr.rel (%p127) target = $region25
    $region24: #{text_encoder.1} parent=1 // pred_region
      %v130 = vld [vmem:[#allocation2] sm:$0xff]
      %v131 = vld [vmem:[#allocation2 + $0x8] sm:$0xff]
      %v132 = vld [vmem:[%s2] sm:$0x1]
      %v134 = vperm.slane %v132, 0
      %v136 = vadd.f32 %v130, %v134
      %v137 = vadd.f32 %v131, %v134
      %v138 = vmul.f32 %v136, %v136
      %v139 = vmul.f32 %v137, %v137
      %140 = vadd.xlane.f32.xlu0 %v138
      %v141 = vpop.xlane.xlu0 %140
      %142 = vadd.xlane.f32.xlu0 %v139
      %v143 = vpop.xlane.xlu0 %142
      %v144 = vmax.f32 %v141, 1e-12
      %v145 = vmax.f32 %v143, 1e-12
      %v146 = vrsqrt.pop %v144
      %v147 = vmul.f32 %v146, %v144
      %v148 = vmul.f32 %v147, %v146
      %v149 = vmul.f32 0.5, %v148
      %v150 = vsub.f32 1.5, %v149
      %v151 = vmul.f32 %v146, %v150
      %vm152 = vweird.f32 %v144
      %vm153 = vweird.f32 %v146
      %vm154 = vmor %vm152, %vm153
      %v155 = vsel %vm154, %v146, %v151
      %v156 = vrsqrt.pop %v145
      %v157 = vmul.f32 %v156, %v145
      %v158 = vmul.f32 %v157, %v156
      %v159 = vmul.f32 0.5, %v158
      %v160 = vsub.f32 1.5, %v159
      %v161 = vmul.f32 %v156, %v160
      %vm162 = vweird.f32 %v145
      %vm163 = vweird.f32 %v156
      %vm164 = vmor %vm162, %vm163
      %v165 = vsel %vm164, %v156, %v161
      %v166 = vmul.f32 %v136, %v155
      %v167 = vmul.f32 %v137, %v165
      %168 = vst [vmem:[%s3] sm:$0xff] %v166
      %169 = vst [vmem:[%s3 + $0x8] sm:$0xff] %v167
    $region25: #{text_encoder.1} parent=1 // pred_fallthru
      _
    // Predicated region
    $region26: #{text_encoder.1} parent=1 // pred_check
      _
    $region27: #{text_encoder.1} parent=1 // pred_check_branch
      %171 = sbr.rel (0) target = $region29
    $region28: #{text_encoder.1} parent=1 // pred_region
      _
    $region29: #{text_encoder.1} parent=1 // pred_fallthru
      _
    // Predicated region
    $region30: #{text_encoder.1} parent=1 // pred_check
      _
    $region31: #{text_encoder.1} parent=1 // pred_check_branch
      %173 = sbr.rel (0) target = $region33
    $region32: #{text_encoder.1} parent=1 // pred_region
      _
    $region33: #{text_encoder.1} parent=1 // pred_fallthru
      _
    %174 = vsyncpa [#allocation4], 1

</llo_original>
